<compile_context>
chip_gen: v6e
topology: v6e:2x2x1
jax: 0.10.0
libtpu: 0.0.40
codegen_flags: <defaults>
</compile_context>

<pallas_src>
import functools

import jax
import jax.numpy as jnp
import numpy as np
from jax import lax
from jax.experimental import pallas as pl
from jax.experimental.pallas import tpu as pltpu


def _triplet_kernel(xr_ref, xa_ref, sqrow_ref, sqblk_ref, tcol_ref, trow_ref,
                    gcol_ref, grow_ref, loss_ref, corr_ref, *, margin):
    xr = xr_ref[...]                                     # (TM, Dp) f32 anchor rows
    xa = xa_ref[...]                                     # (N,  Dp) f32 all rows
    tm = xr.shape[0]

    # squared norms of the anchor rows (column layout) -- cheap in-kernel reduce
    sq_r = jnp.sum(xr * xr, axis=1, keepdims=True)       # (TM, 1)
    sq_c = sqrow_ref[...]                                # (1, N) precomputed norms

    # pairwise squared distances of this row block against everything (MXU gram)
    gram = lax.dot_general(xr, xa, (((1,), (1,)), ((), ())),
                           preferred_element_type=jnp.float32)     # (TM, N)
    d2 = sq_r + sq_c - 2.0 * gram

    # hardest (minimum-distance) negative per anchor. sqrt/clamp are monotone,
    # so take the min on squared distances and sqrt only the (TM, 1) result.
    # (If P == 1 there are no negatives; the min stays at BIG and the hinge
    #  clamps to 0 instead of failing like the reference loop would.)
    is_pos = tcol_ref[...] == trow_ref[...]              # (TM, N) label equality
    big = jnp.float32(1e30)
    an2 = jnp.min(jnp.where(is_pos, big, d2), axis=1, keepdims=True)
    an = jnp.sqrt(jnp.maximum(an2, 1e-12))               # (TM, 1)

    # anchor/positive pairs: K consecutive samples per identity and TM % K == 0,
    # so every positive of this row block lives in the diagonal (TM, TM) column
    # block. Compute that block directly and sqrt only this slab.
    gram_d = lax.dot_general(xr, xr, (((1,), (1,)), ((), ())),
                             preferred_element_type=jnp.float32)   # (TM, TM)
    sq_r_row = sqblk_ref[...]                            # (1, TM) same norms, row layout
    d2_d = sq_r + sq_r_row - 2.0 * gram_d
    ap = jnp.sqrt(jnp.maximum(d2_d, 1e-12))              # (TM, TM)

    # semi-loop pairs: same K-group (index based, like the reference i*K+j loop)
    # and positive index strictly greater than the anchor index.
    row_l = lax.broadcasted_iota(jnp.int32, (tm, tm), 0)
    col_l = lax.broadcasted_iota(jnp.int32, (tm, tm), 1)
    pair_mask = (col_l > row_l) & (gcol_ref[...] == grow_ref[...])

    # MarginRankingLoss(dist_an, dist_ap, y=1) = mean(max(0, ap - an + margin)).
    # Emit this block's partial sums; the wrapper divides by num_pairs.
    hinge = jnp.maximum(ap - an + margin, 0.0)
    loss_ref[0, 0] = jnp.sum(jnp.where(pair_mask, hinge, 0.0))
    corr_ref[0, 0] = jnp.sum(jnp.where(pair_mask & (an > ap), 1.0, 0.0))


def triplet_loss(inputs, targets, *, margin=0.0, num_instances=4):
    """Returns (loss, prec) matching TripletLoss(margin, num_instances, use_semi=True)."""
    n, d = inputs.shape
    K = num_instances
    assert n % K == 0, "batch must contain exactly K samples per identity"
    P = n // K
    num_pairs = P * (K * (K - 1) // 2)

    # Row tile: 128 when it divides N and is a multiple of K, else monolithic.
    if n > 128 and n % 128 == 0 and 128 % K == 0:
        TM = 128
    else:
        TM = n
    assert TM % K == 0 and TM % 8 == 0 and n % TM == 0, (
        "row tile must be a multiple of K and of 8 (f32 sublane)")
    G = n // TM

    # Zero-pad feature dim to a lane multiple: neutral for x.x^T and |x|^2.
    Dp = ((d + 127) // 128) * 128
    x = inputs.astype(jnp.float32)
    if Dp != d:
        x = jnp.pad(x, ((0, 0), (0, Dp - d)))

    sq = jnp.sum(x * x, axis=1)                          # (N,)
    sq_row = sq[None, :]                                 # (1, N)
    t = targets.astype(jnp.int32)
    t_col = t[:, None]                                   # (N, 1)
    t_row = t[None, :]                                   # (1, N)

    # Constant local group ids for the anchor/positive pair mask (index based,
    # identical pattern for every row block since block offsets are multiples of K).
    grp = (np.arange(TM) // K).astype(np.int32)
    grp_col = jnp.asarray(grp)[:, None]                  # (TM, 1)
    grp_row = jnp.asarray(grp)[None, :]                  # (1, TM)

    kernel = functools.partial(_triplet_kernel, margin=float(margin))

    cost = pl.CostEstimate(
        flops=int(2 * n * n * Dp + 2 * n * TM * Dp),
        transcendentals=int(n * TM + n),
        bytes_accessed=int(2 * n * Dp * 4 + 3 * n * 4 + 2 * G * 4),
    )

    loss_parts, corr_parts = pl.pallas_call(
        kernel,
        grid=(G,),
        in_specs=[
            pl.BlockSpec((TM, Dp), lambda i: (i, 0)),     # anchor row block of x
            pl.BlockSpec((n, Dp), lambda i: (0, 0)),      # full x (resident)
            pl.BlockSpec((1, n), lambda i: (0, 0)),       # |x|^2 row (all columns)
            pl.BlockSpec((1, TM), lambda i: (0, i)),      # |x|^2 row (this block)
            pl.BlockSpec((TM, 1), lambda i: (i, 0)),      # labels, column layout
            pl.BlockSpec((1, n), lambda i: (0, 0)),       # labels, row layout
            pl.BlockSpec((TM, 1), lambda i: (0, 0)),      # local group ids (col)
            pl.BlockSpec((1, TM), lambda i: (0, 0)),      # local group ids (row)
        ],
        out_specs=[
            pl.BlockSpec((1, 1), lambda i: (i, 0),
                         memory_space=pltpu.MemorySpace.SMEM),
            pl.BlockSpec((1, 1), lambda i: (i, 0),
                         memory_space=pltpu.MemorySpace.SMEM),
        ],
        out_shape=(
            jax.ShapeDtypeStruct((G, 1), jnp.float32),
            jax.ShapeDtypeStruct((G, 1), jnp.float32),
        ),
        compiler_params=pltpu.CompilerParams(
            dimension_semantics=("parallel",),
            vmem_limit_bytes=48 * 1024 * 1024,
        ),
        cost_estimate=cost,
    )(x, x, sq_row, sq_row, t_col, t_row, grp_col, grp_row)

    loss = jnp.sum(loss_parts) / float(num_pairs)
    prec = jnp.sum(corr_parts) / float(num_pairs)
    return loss, prec


def _reference_numpy(inputs, targets, margin, K):
    """Direct transcription of the PyTorch forward (use_semi=True) for verification."""
    x = np.asarray(inputs, dtype=np.float64)
    t = np.asarray(targets)
    n = x.shape[0]
    P = n // K
    sq = (x ** 2).sum(1)
    d2 = sq[:, None] + sq[None, :] - 2.0 * (x @ x.T)
    dist = np.sqrt(np.clip(d2, 1e-12, None))
    mask = t[:, None] == t[None, :]
    ap, an = [], []
    for i in range(P):
        for j in range(K):
            neg = dist[i * K + j][~mask[i * K + j]]
            for pair in range(j + 1, K):
                ap.append(dist[i * K + j, i * K + pair])
                an.append(neg.min())
    ap = np.array(ap)
    an = np.array(an)
    loss = np.mean(np.maximum(ap - an + margin, 0.0))
    prec = float((an > ap).sum()) / len(ap)
    return loss, prec


if __name__ == "__main__":
    # Module "parameters" chosen deterministically in-script:
    MARGIN = 0.0          # TripletLoss(margin=0)
    K = 4                 # num_instances
    P = 2                 # identities
    N, D = P * K, 32

    key = jax.random.PRNGKey(0)
    inputs = jax.random.normal(key, (N, D), dtype=jnp.float32)
    targets = jnp.repeat(jnp.arange(P, dtype=jnp.int32), K)   # [0,0,0,0,1,1,1,1]
    epoch = 0  # `epoch` is unused by the reference forward (t0/t1 are dead code)

    loss, prec = triplet_loss(inputs, targets, margin=MARGIN, num_instances=K)
    loss, prec = jax.block_until_ready((loss, prec))

    ref_loss, ref_prec = _reference_numpy(np.array(inputs), np.array(targets), MARGIN, K)
    assert np.allclose(float(loss), ref_loss, rtol=1e-4, atol=1e-5), (float(loss), ref_loss)
    assert np.allclose(float(prec), ref_prec, rtol=1e-6, atol=1e-6), (float(prec), ref_prec)

    print("KERNEL_OK")
</pallas_src>

<mosaic_0001>
module attributes {stable_mosaic.version = 11 : i64} {
  func.func @_triplet_kernel(%arg0: i32, %arg1: memref<8x128xf32, #tpu.memory_space<vmem>>, %arg2: memref<8x128xf32, #tpu.memory_space<vmem>>, %arg3: memref<1x8xf32, #tpu.memory_space<vmem>>, %arg4: memref<1x8xf32, #tpu.memory_space<vmem>>, %arg5: memref<8x1xi32, #tpu.memory_space<vmem>>, %arg6: memref<1x8xi32, #tpu.memory_space<vmem>>, %arg7: memref<8x1xi32, #tpu.memory_space<vmem>>, %arg8: memref<1x8xi32, #tpu.memory_space<vmem>>, %arg9: memref<1x1xf32, #tpu.memory_space<smem>>, %arg10: memref<1x1xf32, #tpu.memory_space<smem>>) attributes {dimension_semantics = [#tpu.dimension_semantics<parallel>], iteration_bounds = array<i64: 1>, scalar_prefetch = 0 : i64, scratch_operands = 0 : i64, tpu.core_type = #tpu.core_type<tc>, window_params = [{transform_indices = @transform_0, window_bounds = array<i64: 8, 128>}, {pipeline_mode = #tpu.pipeline_mode<synchronous>, transform_indices = @transform_1, window_bounds = array<i64: 8, 128>}, {pipeline_mode = #tpu.pipeline_mode<synchronous>, transform_indices = @transform_2, window_bounds = array<i64: 1, 8>}, {transform_indices = @transform_3, window_bounds = array<i64: 1, 8>}, {transform_indices = @transform_4, window_bounds = array<i64: 8, 1>}, {pipeline_mode = #tpu.pipeline_mode<synchronous>, transform_indices = @transform_5, window_bounds = array<i64: 1, 8>}, {pipeline_mode = #tpu.pipeline_mode<synchronous>, transform_indices = @transform_6, window_bounds = array<i64: 8, 1>}, {pipeline_mode = #tpu.pipeline_mode<synchronous>, transform_indices = @transform_7, window_bounds = array<i64: 1, 8>}, {transform_indices = @transform_8, window_bounds = array<i64: 1, 1>}, {transform_indices = @transform_9, window_bounds = array<i64: 1, 1>}]} {
    %c0 = arith.constant 0 : index
    %c0_0 = arith.constant 0 : index
    %0 = vector.load %arg1[%c0, %c0_0] : memref<8x128xf32, #tpu.memory_space<vmem>>, vector<8x128xf32>
    %c0_1 = arith.constant 0 : index
    %c0_2 = arith.constant 0 : index
    %1 = vector.load %arg2[%c0_1, %c0_2] : memref<8x128xf32, #tpu.memory_space<vmem>>, vector<8x128xf32>
    %2 = arith.mulf %0, %0 : vector<8x128xf32>
    %cst = arith.constant dense<0.000000e+00> : vector<8xf32>
    %3 = vector.multi_reduction <add>, %2, %cst [1] : vector<8x128xf32> to vector<8xf32>
    %4 = vector.shape_cast %3 : vector<8xf32> to vector<8x1xf32>
    %c0_3 = arith.constant 0 : index
    %c0_4 = arith.constant 0 : index
    %5 = vector.load %arg3[%c0_3, %c0_4] : memref<1x8xf32, #tpu.memory_space<vmem>>, vector<1x8xf32>
    %cst_5 = arith.constant dense<0.000000e+00> : vector<8x8xf32>
    %6 = tpu.matmul %0, %1, %cst_5 {dimension_numbers = #tpu.dot_dimension_numbers<[1], [1], [0], [0], [0, 0, 1, 0], [], []>} : vector<8x128xf32>, vector<8x128xf32>, vector<8x8xf32> -> vector<8x8xf32>
    %7 = vector.broadcast %4 : vector<8x1xf32> to vector<8x8xf32>
    %8 = vector.broadcast %5 : vector<1x8xf32> to vector<8x8xf32>
    %9 = arith.addf %7, %8 : vector<8x8xf32>
    %cst_6 = arith.constant 2.000000e+00 : f32
    %10 = vector.broadcast %cst_6 : f32 to vector<8x8xf32>
    %11 = arith.mulf %10, %6 : vector<8x8xf32>
    %12 = arith.subf %9, %11 : vector<8x8xf32>
    %c0_7 = arith.constant 0 : index
    %c0_8 = arith.constant 0 : index
    %13 = vector.load %arg5[%c0_7, %c0_8] : memref<8x1xi32, #tpu.memory_space<vmem>>, vector<8x1xi32>
    %c0_9 = arith.constant 0 : index
    %c0_10 = arith.constant 0 : index
    %14 = vector.load %arg6[%c0_9, %c0_10] : memref<1x8xi32, #tpu.memory_space<vmem>>, vector<1x8xi32>
    %15 = vector.broadcast %13 : vector<8x1xi32> to vector<8x8xi32>
    %16 = vector.broadcast %14 : vector<1x8xi32> to vector<8x8xi32>
    %17 = arith.cmpi eq, %15, %16 : vector<8x8xi32>
    %cst_11 = arith.constant 1.000000e+30 : f32
    %18 = vector.broadcast %cst_11 : f32 to vector<8x8xf32>
    %19 = arith.select %17, %18, %12 : vector<8x8xi1>, vector<8x8xf32>
    %cst_12 = arith.constant dense<0x7F800000> : vector<8xf32>
    %20 = vector.multi_reduction <minimumf>, %19, %cst_12 [1] : vector<8x8xf32> to vector<8xf32>
    %21 = vector.shape_cast %20 : vector<8xf32> to vector<8x1xf32>
    %cst_13 = arith.constant 9.99999996E-13 : f32
    %22 = vector.broadcast %cst_13 : f32 to vector<8x1xf32>
    %23 = arith.maximumf %21, %22 : vector<8x1xf32>
    %24 = math.sqrt %23 : vector<8x1xf32>
    %cst_14 = arith.constant dense<0.000000e+00> : vector<8x8xf32>
    %25 = tpu.matmul %0, %0, %cst_14 {dimension_numbers = #tpu.dot_dimension_numbers<[1], [1], [0], [0], [0, 0, 1, 0], [], []>} : vector<8x128xf32>, vector<8x128xf32>, vector<8x8xf32> -> vector<8x8xf32>
    %c0_15 = arith.constant 0 : index
    %c0_16 = arith.constant 0 : index
    %26 = vector.load %arg4[%c0_15, %c0_16] : memref<1x8xf32, #tpu.memory_space<vmem>>, vector<1x8xf32>
    %27 = vector.broadcast %4 : vector<8x1xf32> to vector<8x8xf32>
    %28 = vector.broadcast %26 : vector<1x8xf32> to vector<8x8xf32>
    %29 = arith.addf %27, %28 : vector<8x8xf32>
    %cst_17 = arith.constant 2.000000e+00 : f32
    %30 = vector.broadcast %cst_17 : f32 to vector<8x8xf32>
    %31 = arith.mulf %30, %25 : vector<8x8xf32>
    %32 = arith.subf %29, %31 : vector<8x8xf32>
    %cst_18 = arith.constant 9.99999996E-13 : f32
    %33 = vector.broadcast %cst_18 : f32 to vector<8x8xf32>
    %34 = arith.maximumf %32, %33 : vector<8x8xf32>
    %35 = math.sqrt %34 : vector<8x8xf32>
    %36 = tpu.iota {dimensions = array<i32: 0>} : vector<8x8xi32>
    %37 = tpu.iota {dimensions = array<i32: 1>} : vector<8x8xi32>
    %38 = arith.cmpi sgt, %37, %36 : vector<8x8xi32>
    %c0_19 = arith.constant 0 : index
    %c0_20 = arith.constant 0 : index
    %39 = vector.load %arg7[%c0_19, %c0_20] : memref<8x1xi32, #tpu.memory_space<vmem>>, vector<8x1xi32>
    %c0_21 = arith.constant 0 : index
    %c0_22 = arith.constant 0 : index
    %40 = vector.load %arg8[%c0_21, %c0_22] : memref<1x8xi32, #tpu.memory_space<vmem>>, vector<1x8xi32>
    %41 = vector.broadcast %39 : vector<8x1xi32> to vector<8x8xi32>
    %42 = vector.broadcast %40 : vector<1x8xi32> to vector<8x8xi32>
    %43 = arith.cmpi eq, %41, %42 : vector<8x8xi32>
    %44 = arith.andi %38, %43 : vector<8x8xi1>
    %45 = vector.broadcast %24 : vector<8x1xf32> to vector<8x8xf32>
    %46 = arith.subf %35, %45 : vector<8x8xf32>
    %cst_23 = arith.constant 0.000000e+00 : f32
    %47 = vector.broadcast %cst_23 : f32 to vector<8x8xf32>
    %48 = arith.addf %46, %47 : vector<8x8xf32>
    %cst_24 = arith.constant 0.000000e+00 : f32
    %49 = vector.broadcast %cst_24 : f32 to vector<8x8xf32>
    %50 = arith.maximumf %48, %49 : vector<8x8xf32>
    %cst_25 = arith.constant 0.000000e+00 : f32
    %51 = vector.broadcast %cst_25 : f32 to vector<8x8xf32>
    %52 = arith.select %44, %50, %51 : vector<8x8xi1>, vector<8x8xf32>
    %53 = vector.shape_cast %52 : vector<8x8xf32> to vector<1x8x8xf32>
    %cst_26 = arith.constant dense<0.000000e+00> : vector<1xf32>
    %54 = vector.multi_reduction <add>, %53, %cst_26 [1, 2] : vector<1x8x8xf32> to vector<1xf32>
    %55 = vector.shape_cast %54 : vector<1xf32> to vector<1x1x1xf32>
    %56 = vector.extract %55[0, 0, 0] : f32 from vector<1x1x1xf32>
    %c0_27 = arith.constant 0 : index
    %c0_28 = arith.constant 0 : index
    %57 = memref.load %arg9[%c0_27, %c0_28] : memref<1x1xf32, #tpu.memory_space<smem>>
    memref.store %56, %arg9[%c0_27, %c0_28] : memref<1x1xf32, #tpu.memory_space<smem>>
    %58 = vector.broadcast %24 : vector<8x1xf32> to vector<8x8xf32>
    %59 = arith.cmpf ogt, %58, %35 : vector<8x8xf32>
    %60 = arith.andi %44, %59 : vector<8x8xi1>
    %cst_29 = arith.constant 1.000000e+00 : f32
    %cst_30 = arith.constant 0.000000e+00 : f32
    %61 = vector.broadcast %cst_29 : f32 to vector<8x8xf32>
    %62 = vector.broadcast %cst_30 : f32 to vector<8x8xf32>
    %63 = arith.select %60, %61, %62 : vector<8x8xi1>, vector<8x8xf32>
    %64 = vector.shape_cast %63 : vector<8x8xf32> to vector<1x8x8xf32>
    %cst_31 = arith.constant dense<0.000000e+00> : vector<1xf32>
    %65 = vector.multi_reduction <add>, %64, %cst_31 [1, 2] : vector<1x8x8xf32> to vector<1xf32>
    %66 = vector.shape_cast %65 : vector<1xf32> to vector<1x1x1xf32>
    %67 = vector.extract %66[0, 0, 0] : f32 from vector<1x1x1xf32>
    %c0_32 = arith.constant 0 : index
    %c0_33 = arith.constant 0 : index
    %68 = memref.load %arg10[%c0_32, %c0_33] : memref<1x1xf32, #tpu.memory_space<smem>>
    memref.store %67, %arg10[%c0_32, %c0_33] : memref<1x1xf32, #tpu.memory_space<smem>>
    return
  }
  func.func @transform_0(%arg0: i32) -> (i32, i32) {
    %c0_i32 = arith.constant 0 : i32
    %c0_i32_0 = arith.constant 0 : i32
    return %arg0, %c0_i32 : i32, i32
  }
  func.func @transform_1(%arg0: i32) -> (i32, i32) {
    %c0_i32 = arith.constant 0 : i32
    %c0_i32_0 = arith.constant 0 : i32
    %c0_i32_1 = arith.constant 0 : i32
    return %c0_i32, %c0_i32_0 : i32, i32
  }
  func.func @transform_2(%arg0: i32) -> (i32, i32) {
    %c0_i32 = arith.constant 0 : i32
    %c0_i32_0 = arith.constant 0 : i32
    %c0_i32_1 = arith.constant 0 : i32
    return %c0_i32, %c0_i32_0 : i32, i32
  }
  func.func @transform_3(%arg0: i32) -> (i32, i32) {
    %c0_i32 = arith.constant 0 : i32
    %c0_i32_0 = arith.constant 0 : i32
    return %c0_i32, %arg0 : i32, i32
  }
  func.func @transform_4(%arg0: i32) -> (i32, i32) {
    %c0_i32 = arith.constant 0 : i32
    %c0_i32_0 = arith.constant 0 : i32
    return %arg0, %c0_i32 : i32, i32
  }
  func.func @transform_5(%arg0: i32) -> (i32, i32) {
    %c0_i32 = arith.constant 0 : i32
    %c0_i32_0 = arith.constant 0 : i32
    %c0_i32_1 = arith.constant 0 : i32
    return %c0_i32, %c0_i32_0 : i32, i32
  }
  func.func @transform_6(%arg0: i32) -> (i32, i32) {
    %c0_i32 = arith.constant 0 : i32
    %c0_i32_0 = arith.constant 0 : i32
    %c0_i32_1 = arith.constant 0 : i32
    return %c0_i32, %c0_i32_0 : i32, i32
  }
  func.func @transform_7(%arg0: i32) -> (i32, i32) {
    %c0_i32 = arith.constant 0 : i32
    %c0_i32_0 = arith.constant 0 : i32
    %c0_i32_1 = arith.constant 0 : i32
    return %c0_i32, %c0_i32_0 : i32, i32
  }
  func.func @transform_8(%arg0: i32) -> (i32, i32) {
    %c0_i32 = arith.constant 0 : i32
    %c0_i32_0 = arith.constant 0 : i32
    return %arg0, %c0_i32 : i32, i32
  }
  func.func @transform_9(%arg0: i32) -> (i32, i32) {
    %c0_i32 = arith.constant 0 : i32
    %c0_i32_0 = arith.constant 0 : i32
    return %arg0, %c0_i32 : i32, i32
  }
}

</mosaic_0001>

<llo_original>
// kernel: tpu_custom_call.1
$region0: #{tpu_custom_call.1}
  #allocation0 [shape = 'u32[]', space=smem, size = 0x4, offset = 0x4, fixed_abs, tag = 'smem constant byte address 0x4 - core index']
  #allocation1 [shape = 'u32[144,128]{1,0:T(1,128)}', space=vmem, size = 0x12000, scoped, tag = 'internal scratch']
  %s0 = inlined_call_operand.vmem [shape: f32[8,128], index: 0, kind: input, shape index: {}]
  %s1 = inlined_call_operand.vmem [shape: f32[8,128], index: 1, kind: input, shape index: {}]
  %s2 = inlined_call_operand.vmem [shape: f32[1,8], index: 2, kind: input, shape index: {}]
  %s3 = inlined_call_operand.vmem [shape: f32[1,8], index: 3, kind: input, shape index: {}]
  %s4 = inlined_call_operand.vmem [shape: s32[8,1], index: 4, kind: input, shape index: {}]
  %s5 = inlined_call_operand.vmem [shape: s32[1,8], index: 5, kind: input, shape index: {}]
  %s6 = inlined_call_operand.vmem [shape: s32[8,1], index: 6, kind: input, shape index: {}]
  %s7 = inlined_call_operand.vmem [shape: s32[1,8], index: 7, kind: input, shape index: {}]
  %s8 = inlined_call_operand.hbm [shape: f32[1,1], index: 8, kind: output, shape index: {0}]
  %s9 = inlined_call_operand.hbm [shape: f32[1,1], index: 9, kind: output, shape index: {1}]
  %10 = xla_tuple %s8, %s9
  %s11 = sld [smem:[#allocation0]]
  $region50: #{tpu_custom_call.1} parent=0
    _
  %s13 = ssub.s32 1, %s11
  %s14 = scalar_select 0, %s13, %s11
  $region1: #{tpu_custom_call.1} parent=0
    #allocation2 [shape = 'u8[512]{0}', space=smem, size = 0x200, scoped, tag = 'output window, operand 0, single buffered']
    #allocation3 [shape = 's32[1]{0}', space=sflag, size = 0x4, scoped, tag = 'scoped memory for tpu_custom_call.1']
    #allocation4 [shape = 'u8[512]{0}', space=smem, size = 0x200, scoped, tag = 'output window, operand 1, single buffered']
    #allocation5 [shape = 's32[1]{0}', space=sflag, size = 0x4, scoped, tag = 'scoped memory for tpu_custom_call.1']
    %15 = vsyncpa [#allocation3], 0
    %16 = vsyncpa [#allocation5], 0
    // Predicated region
    $region2: #{tpu_custom_call.1} parent=1 // pred_check
      _
    $region3: #{tpu_custom_call.1} parent=1 // pred_check_branch
      %18 = sbr.rel (0) target = $region5
    $region4: #{tpu_custom_call.1} parent=1 // pred_region
      _
    $region5: #{tpu_custom_call.1} parent=1 // pred_fallthru
      _
    // Predicated region
    $region6: #{tpu_custom_call.1} parent=1 // pred_check
      _
    $region7: #{tpu_custom_call.1} parent=1 // pred_check_branch
      %20 = sbr.rel (0) target = $region9
    $region8: #{tpu_custom_call.1} parent=1 // pred_region
      _
    $region9: #{tpu_custom_call.1} parent=1 // pred_fallthru
      _
    // Predicated region
    $region10: #{tpu_custom_call.1} parent=1 // pred_check
      _
    $region11: #{tpu_custom_call.1} parent=1 // pred_check_branch
      %22 = sbr.rel (0) target = $region13
    $region12: #{tpu_custom_call.1} parent=1 // pred_region
      _
    $region13: #{tpu_custom_call.1} parent=1 // pred_fallthru
      _
    // Predicated region
    $region14: #{tpu_custom_call.1} parent=1 // pred_check
      _
    $region15: #{tpu_custom_call.1} parent=1 // pred_check_branch
      %24 = sbr.rel (0) target = $region17
    $region16: #{tpu_custom_call.1} parent=1 // pred_region
      _
    $region17: #{tpu_custom_call.1} parent=1 // pred_fallthru
      _
    // Predicated region
    $region18: #{tpu_custom_call.1} parent=1 // pred_check
      _
    $region19: #{tpu_custom_call.1} parent=1 // pred_check_branch
      %26 = sbr.rel (0) target = $region21
    $region20: #{tpu_custom_call.1} parent=1 // pred_region
      _
    $region21: #{tpu_custom_call.1} parent=1 // pred_fallthru
      _
    // Predicated region
    $region22: #{tpu_custom_call.1} parent=1 // pred_check
      _
    $region23: #{tpu_custom_call.1} parent=1 // pred_check_branch
      %28 = sbr.rel (0) target = $region25
    $region24: #{tpu_custom_call.1} parent=1 // pred_region
      _
    $region25: #{tpu_custom_call.1} parent=1 // pred_fallthru
      _
    // Predicated region
    $region26: #{tpu_custom_call.1} parent=1 // pred_check
      _
    $region27: #{tpu_custom_call.1} parent=1 // pred_check_branch
      %30 = sbr.rel (0) target = $region29
    $region28: #{tpu_custom_call.1} parent=1 // pred_region
      _
    $region29: #{tpu_custom_call.1} parent=1 // pred_fallthru
      _
    // Predicated region
    $region30: #{tpu_custom_call.1} parent=1 // pred_check
      _
    $region31: #{tpu_custom_call.1} parent=1 // pred_check_branch
      %32 = sbr.rel (0) target = $region33
    $region32: #{tpu_custom_call.1} parent=1 // pred_region
      _
    $region33: #{tpu_custom_call.1} parent=1 // pred_fallthru
      _
    %v33 = vld [vmem:[%s0] sm:$0xff]
    %v34 = vld [vmem:[%s1] sm:$0xff]
    %v35 = vmul.f32 %v33, %v33
    %36 = vadd.xlane.f32.xlu0 %v35
    %v37 = vpop.xlane.xlu0 %36
    %v38 = vld [vmem:[%s2] sm:$0x1]
    %39 = vmatprep.subr.mxu0 0.0
    %40 = vmatpush1.xpose.msra.mxu0 0.0
    %41 = vmatprep.subr.mxu0 0.0
    %42 = vmatpush1.xpose.msra.mxu0 0.0
    %43 = vmatprep.subr.mxu0 0.0
    %44 = vmatpush1.xpose.msra.mxu0 0.0
    %45 = vmatprep.subr.mxu0 0.0
    %46 = vmatpush1.xpose.msra.mxu0 0.0
    %47 = vmatprep.subr.mxu0 0.0
    %48 = vmatpush1.xpose.msra.mxu0 0.0
    %49 = vmatprep.subr.mxu0 0.0
    %50 = vmatpush1.xpose.msra.mxu0 0.0
    %51 = vmatprep.subr.mxu0 0.0
    %52 = vmatpush1.xpose.msra.mxu0 0.0
    %53 = vmatprep.subr.mxu0 0.0
    %54 = vmatpush1.xpose.msra.mxu0 0.0
    %55 = vmatprep.subr.mxu0 0.0
    %56 = vmatpush1.xpose.msra.mxu0 0.0
    %57 = vmatprep.subr.mxu0 0.0
    %58 = vmatpush1.xpose.msra.mxu0 0.0
    %59 = vmatprep.subr.mxu0 0.0
    %60 = vmatpush1.xpose.msra.mxu0 0.0
    %61 = vmatprep.subr.mxu0 0.0
    %62 = vmatpush1.xpose.msra.mxu0 0.0
    %63 = vmatprep.subr.mxu0 0.0
    %64 = vmatpush1.xpose.msra.mxu0 0.0
    %65 = vmatprep.subr.mxu0 0.0
    %66 = vmatpush1.xpose.msra.mxu0 0.0
    %67 = vmatprep.subr.mxu0 0.0
    %68 = vmatpush1.xpose.msra.mxu0 0.0
    %69 = vmatprep.subr.mxu0 0.0
    %70 = vmatpush1.xpose.msra.mxu0 %v34
    %71 = vmatprep.subr.mxu0 0.0
    %72 = vmatpush2.xpose.msra.mxu0 0.0
    %73 = vmatprep.subr.mxu0 0.0
    %74 = vmatpush2.xpose.msra.mxu0 0.0
    %75 = vmatprep.subr.mxu0 0.0
    %76 = vmatpush2.xpose.msra.mxu0 0.0
    %77 = vmatprep.subr.mxu0 0.0
    %78 = vmatpush2.xpose.msra.mxu0 0.0
    %79 = vmatprep.subr.mxu0 0.0
    %80 = vmatpush2.xpose.msra.mxu0 0.0
    %81 = vmatprep.subr.mxu0 0.0
    %82 = vmatpush2.xpose.msra.mxu0 0.0
    %83 = vmatprep.subr.mxu0 0.0
    %84 = vmatpush2.xpose.msra.mxu0 0.0
    %85 = vmatprep.subr.mxu0 0.0
    %86 = vmatpush2.xpose.msra.mxu0 0.0
    %87 = vmatprep.subr.mxu0 0.0
    %88 = vmatpush2.xpose.msra.mxu0 0.0
    %89 = vmatprep.subr.mxu0 0.0
    %90 = vmatpush2.xpose.msra.mxu0 0.0
    %91 = vmatprep.subr.mxu0 0.0
    %92 = vmatpush2.xpose.msra.mxu0 0.0
    %93 = vmatprep.subr.mxu0 0.0
    %94 = vmatpush2.xpose.msra.mxu0 0.0
    %95 = vmatprep.subr.mxu0 0.0
    %96 = vmatpush2.xpose.msra.mxu0 0.0
    %97 = vmatprep.subr.mxu0 0.0
    %98 = vmatpush2.xpose.msra.mxu0 0.0
    %99 = vmatprep.subr.mxu0 0.0
    %100 = vmatpush2.xpose.msra.mxu0 0.0
    %101 = vmatprep.subr.mxu0 0.0
    %102 = vmatpush2.xpose.msra.mxu0 0.0
    %103 = vmatprep.mubr.f32.mxu0 0.0
    %104 = vmatmul.mubr.f32.gmra.mxu0 %v33
    %v105 = vpop.f32.mrf.mxu0
    %v106 = vadd.f32 0.0, %v105
    %v107 = vpop.f32.mrf.mxu0
    %108 = vdwg.mxu0
    %v110 = vlaneseq
    %v111 = vshrl.u32 %v110, 7
    %v112 = vsub.s32 0, %v111
    %v113 = vrot.slane %v38, %v112
    %v115 = vadd.f32 %v37, %v113
    %v116 = vmul.f32 %v106, 2.0
    %v117 = vsub.f32 %v115, %v116
    %v118 = vld [vmem:[%s4] sm:$0xff]
    %v119 = vld [vmem:[%s5] sm:$0x1]
    %120 = vset.pattern.permute.xlu0 0
    %121 = vperm.xlu0 %120, %v118
    %v122 = vpop.permute.xlu0 %121
    %v123 = vlaneseq
    %v124 = vshrl.u32 %v123, 7
    %v125 = vsub.s32 0, %v124
    %v126 = vrot.slane %v119, %v125
    %vm127 = vcmp.eq.s32.totalorder %v122, %v126
    %v128 = vsel %vm127, 1e+30, %v117
    %vm129 = vcmask 64512
    %v130 = vsel %vm129, %v128, inf
    %131 = vmin.xlane.f32.xlu0 %v130
    %v132 = vpop.xlane.xlu0 %131
    %v133 = vmax.f32 %v132, 1e-12
    %v134 = vrsqrt.pop %v133
    %v135 = vmul.f32 %v133, %v134
    %vm136 = vcmp.eq.f32.partialorder %v133, inf
    %v137 = vsel %vm136, %v133, %v135
    %vm138 = vcmp.eq.f32.partialorder %v133, 0.0
    %v139 = vand.u32 %v133, 2147483648
    %v140 = vsel %vm138, %v139, %v137
    %141 = vmatprep.subr.mxu0 0.0
    %142 = vmatpush1.xpose.msra.mxu0 0.0
    %143 = vmatprep.subr.mxu0 0.0
    %144 = vmatpush1.xpose.msra.mxu0 0.0
    %145 = vmatprep.subr.mxu0 0.0
    %146 = vmatpush1.xpose.msra.mxu0 0.0
    %147 = vmatprep.subr.mxu0 0.0
    %148 = vmatpush1.xpose.msra.mxu0 0.0
    %149 = vmatprep.subr.mxu0 0.0
    %150 = vmatpush1.xpose.msra.mxu0 0.0
    %151 = vmatprep.subr.mxu0 0.0
    %152 = vmatpush1.xpose.msra.mxu0 0.0
    %153 = vmatprep.subr.mxu0 0.0
    %154 = vmatpush1.xpose.msra.mxu0 0.0
    %155 = vmatprep.subr.mxu0 0.0
    %156 = vmatpush1.xpose.msra.mxu0 0.0
    %157 = vmatprep.subr.mxu0 0.0
    %158 = vmatpush1.xpose.msra.mxu0 0.0
    %159 = vmatprep.subr.mxu0 0.0
    %160 = vmatpush1.xpose.msra.mxu0 0.0
    %161 = vmatprep.subr.mxu0 0.0
    %162 = vmatpush1.xpose.msra.mxu0 0.0
    %163 = vmatprep.subr.mxu0 0.0
    %164 = vmatpush1.xpose.msra.mxu0 0.0
    %165 = vmatprep.subr.mxu0 0.0
    %166 = vmatpush1.xpose.msra.mxu0 0.0
    %167 = vmatprep.subr.mxu0 0.0
    %168 = vmatpush1.xpose.msra.mxu0 0.0
    %169 = vmatprep.subr.mxu0 0.0
    %170 = vmatpush1.xpose.msra.mxu0 0.0
    %171 = vmatprep.subr.mxu0 0.0
    %172 = vmatpush1.xpose.msra.mxu0 %v33
    %173 = vmatprep.subr.mxu0 0.0
    %174 = vmatpush2.xpose.msra.mxu0 0.0
    %175 = vmatprep.subr.mxu0 0.0
    %176 = vmatpush2.xpose.msra.mxu0 0.0
    %177 = vmatprep.subr.mxu0 0.0
    %178 = vmatpush2.xpose.msra.mxu0 0.0
    %179 = vmatprep.subr.mxu0 0.0
    %180 = vmatpush2.xpose.msra.mxu0 0.0
    %181 = vmatprep.subr.mxu0 0.0
    %182 = vmatpush2.xpose.msra.mxu0 0.0
    %183 = vmatprep.subr.mxu0 0.0
    %184 = vmatpush2.xpose.msra.mxu0 0.0
    %185 = vmatprep.subr.mxu0 0.0
    %186 = vmatpush2.xpose.msra.mxu0 0.0
    %187 = vmatprep.subr.mxu0 0.0
    %188 = vmatpush2.xpose.msra.mxu0 0.0
    %189 = vmatprep.subr.mxu0 0.0
    %190 = vmatpush2.xpose.msra.mxu0 0.0
    %191 = vmatprep.subr.mxu0 0.0
    %192 = vmatpush2.xpose.msra.mxu0 0.0
    %193 = vmatprep.subr.mxu0 0.0
    %194 = vmatpush2.xpose.msra.mxu0 0.0
    %195 = vmatprep.subr.mxu0 0.0
    %196 = vmatpush2.xpose.msra.mxu0 0.0
    %197 = vmatprep.subr.mxu0 0.0
    %198 = vmatpush2.xpose.msra.mxu0 0.0
    %199 = vmatprep.subr.mxu0 0.0
    %200 = vmatpush2.xpose.msra.mxu0 0.0
    %201 = vmatprep.subr.mxu0 0.0
    %202 = vmatpush2.xpose.msra.mxu0 0.0
    %203 = vmatprep.subr.mxu0 0.0
    %204 = vmatpush2.xpose.msra.mxu0 0.0
    %205 = vmatprep.mubr.f32.mxu0 0.0
    %206 = vmatmul.mubr.f32.gmra.mxu0 %v33
    %v207 = vpop.f32.mrf.mxu0
    %v208 = vadd.f32 0.0, %v207
    %v209 = vpop.f32.mrf.mxu0
    %210 = vdwg.mxu0
    %v211 = vld [vmem:[%s3] sm:$0x1]
    %v213 = vlaneseq
    %v214 = vshrl.u32 %v213, 7
    %v215 = vsub.s32 0, %v214
    %v216 = vrot.slane %v211, %v215
    %v218 = vadd.f32 %v37, %v216
    %v219 = vmul.f32 %v208, 2.0
    %v220 = vsub.f32 %v218, %v219
    %v221 = vmax.f32 %v220, 1e-12
    %v222 = vrsqrt.pop %v221
    %v223 = vmul.f32 %v221, %v222
    %vm224 = vcmp.eq.f32.partialorder %v221, inf
    %v225 = vsel %vm224, %v221, %v223
    %vm226 = vcmp.eq.f32.partialorder %v221, 0.0
    %v227 = vand.u32 %v221, 2147483648
    %v228 = vsel %vm226, %v227, %v225
    %v229 = vlaneseq
    %v230 = vshrl.u32 %v229, 7
    %v231 = vlaneseq
    %v232 = vand.u32 %v231, 127
    %vm233 = vcmp.gt.s32.totalorder %v232, %v230
    %v234 = vld [vmem:[%s6] sm:$0xff]
    %v235 = vld [vmem:[%s7] sm:$0x1]
    %236 = vset.pattern.permute.xlu0 0
    %237 = vperm.xlu0 %236, %v234
    %v238 = vpop.permute.xlu0 %237
    %v239 = vlaneseq
    %v240 = vshrl.u32 %v239, 7
    %v241 = vsub.s32 0, %v240
    %v242 = vrot.slane %v235, %v241
    %vm243 = vcmp.eq.s32.totalorder %v238, %v242
    %vm244 = vmand %vm233, %vm243
    %v245 = vsub.f32 %v228, %v140
    %v246 = vadd.f32 %v245, 0.0
    %v247 = vmax.f32 %v246, 0.0
    %v248 = vsel %vm244, %v247, 0.0
    %v249 = vsel %vm129, %v248, 0.0
    %250 = vadd.xlane.f32.xlu0 %v249
    %v251 = vpop.xlane.xlu0 %250
    %v252 = vrot.slane %v251, 4
    %v253 = vadd.f32 %v251, %v252
    %v254 = vrot.slane %v253, 2
    %v255 = vadd.f32 %v253, %v254
    %v256 = vrot.slane %v255, 1
    %v257 = vadd.f32 %v255, %v256
    %s258 = vtos %v257
    %s259 = scalar_lea.smem [#allocation2], 0
    %260 = sst [smem:[%s259]] %s258
    %vm261 = vcmp.gt.f32.partialorder %v140, %v228
    %vm262 = vmand %vm244, %vm261
    %v263 = vsel %vm262, 1.0, 0.0
    %v264 = vsel %vm129, %v263, 0.0
    %265 = vadd.xlane.f32.xlu0 %v264
    %v266 = vpop.xlane.xlu0 %265
    %v267 = vrot.slane %v266, 4
    %v268 = vadd.f32 %v266, %v267
    %v269 = vrot.slane %v268, 2
    %v270 = vadd.f32 %v268, %v269
    %v271 = vrot.slane %v270, 1
    %v272 = vadd.f32 %v270, %v271
    %s273 = vtos %v272
    %s274 = scalar_lea.smem [#allocation4], 0
    %275 = sst [smem:[%s274]] %s273
    // Predicated region
    $region34: #{tpu_custom_call.1} parent=1 // pred_check
      _
    $region35: #{tpu_custom_call.1} parent=1 // pred_check_branch
      %277 = sbr.rel (0) target = $region37
    $region36: #{tpu_custom_call.1} parent=1 // pred_region
      %s279 = ssub.s32 16, 16
      %280 = vsyncadd [#allocation3], %s279
      %283 = dma.smem_to_hbm [#allocation2], 16, %s8, [#allocation3]
    $region37: #{tpu_custom_call.1} parent=1 // pred_fallthru
      _
    // Predicated region
    $region38: #{tpu_custom_call.1} parent=1 // pred_check
      _
    $region39: #{tpu_custom_call.1} parent=1 // pred_check_branch
      %285 = sbr.rel (0) target = $region41
    $region40: #{tpu_custom_call.1} parent=1 // pred_region
      %s287 = ssub.s32 16, 16
      %288 = vsyncadd [#allocation5], %s287
      %291 = dma.smem_to_hbm [#allocation4], 16, %s9, [#allocation5]
    $region41: #{tpu_custom_call.1} parent=1 // pred_fallthru
      _
    // Predicated region
    $region42: #{tpu_custom_call.1} parent=1 // pred_check
      _
    $region43: #{tpu_custom_call.1} parent=1 // pred_check_branch
      %293 = sbr.rel (0) target = $region45
    $region44: #{tpu_custom_call.1} parent=1 // pred_region
      %294 = dma.done [#allocation3], 16
    $region45: #{tpu_custom_call.1} parent=1 // pred_fallthru
      _
    // Predicated region
    $region46: #{tpu_custom_call.1} parent=1 // pred_check
      _
    $region47: #{tpu_custom_call.1} parent=1 // pred_check_branch
      %296 = sbr.rel (0) target = $region49
    $region48: #{tpu_custom_call.1} parent=1 // pred_region
      %297 = dma.done [#allocation5], 16
    $region49: #{tpu_custom_call.1} parent=1 // pred_fallthru
      _
    %298 = sfence
    %299 = vsyncpa [#allocation3], 1
    %300 = vsyncpa [#allocation5], 1

</llo_original>
